<compile_context>
chip_gen: v6e
topology: v6e:2x2x1
jax: 0.10.0
libtpu: 0.0.40
codegen_flags: <defaults>
</compile_context>

<pallas_src>
import math

import jax
import jax.numpy as jnp
from jax.experimental import pallas as pl
from jax.experimental.pallas import tpu as pltpu


# ---------------------------------------------------------------------------
# Stage 1: bias-free Linear projection   y = x_flat @ W^T
# ---------------------------------------------------------------------------
def _linear_kernel(x_ref, wt_ref, o_ref):
    # x_ref : (tm, E)  tile of flattened (batch*seq) rows
    # wt_ref: (E, E)   resident transposed weight (W^T)
    o_ref[...] = jnp.dot(
        x_ref[...], wt_ref[...], preferred_element_type=jnp.float32
    ).astype(o_ref.dtype)


def _pick_row_tile(m, tm_max):
    tm = min(tm_max, m)
    # keep at least 2 grid steps when possible (v7x: 2 TensorCores share the
    # "parallel" grid axis)
    if tm == m and m >= 16:
        tm = m // 2
    return max(8, (tm // 8) * 8)  # sublane alignment


def _linear(x_flat, wt, *, tm_max=1024):
    m, e_in = x_flat.shape
    e_out = wt.shape[1]
    tm = _pick_row_tile(m, tm_max)
    pad = (-m) % tm
    if pad:
        x_flat = jnp.pad(x_flat, ((0, pad), (0, 0)))
    mp = m + pad

    y = pl.pallas_call(
        _linear_kernel,
        out_shape=jax.ShapeDtypeStruct((mp, e_out), x_flat.dtype),
        grid_spec=pltpu.PrefetchScalarGridSpec(
            num_scalar_prefetch=0,
            grid=(mp // tm,),
            in_specs=[
                pl.BlockSpec((tm, e_in), lambda i: (i, 0)),      # x row tile
                pl.BlockSpec((e_in, e_out), lambda i: (0, 0)),   # resident W^T
            ],
            out_specs=pl.BlockSpec((tm, e_out), lambda i: (i, 0)),
        ),
        compiler_params=pltpu.CompilerParams(
            dimension_semantics=("parallel",)),
    )(x_flat, wt)
    return y[:m] if pad else y


# ---------------------------------------------------------------------------
# Stage 2: self-attention with Q = K = V, batched over (batch*head) groups
# ---------------------------------------------------------------------------
def _attention_kernel(q_ref, o_ref):
    # q_ref / o_ref: (G, S, D) — G (batch, head) slices per grid step
    q = q_ref[...].astype(jnp.float32)
    scale = 1.0 / math.sqrt(q.shape[-1])
    s = jnp.einsum("gqd,gkd->gqk", q, q,
                   preferred_element_type=jnp.float32) * scale
    m = jnp.max(s, axis=-1, keepdims=True)
    p = jnp.exp(s - m)
    l = jnp.sum(p, axis=-1, keepdims=True)
    attn = p / l
    o = jnp.einsum("gqk,gkd->gqd", attn, q,
                   preferred_element_type=jnp.float32)
    o_ref[...] = o.astype(o_ref.dtype)


def _pick_head_group(bn, seq, *, max_bytes=4 << 20):
    # largest divisor of bn whose (G, S, S) f32 score block stays modest in
    # VMEM and which still leaves >= 2 grid steps when bn allows it
    best = 1
    for g in range(1, bn + 1):
        if bn % g:
            continue
        if g * seq * seq * 4 > max_bytes:
            continue
        if bn >= 2 and bn // g < 2:
            continue
        best = g
    return best


# ---------------------------------------------------------------------------
# Full forward
# ---------------------------------------------------------------------------
def cheap_attention_forward(x, w_lin, num_heads, *, tm_max=1024):
    """x: (B, S, E); w_lin: (E, E) torch nn.Linear weight (out, in), no bias."""
    B, S, E = x.shape
    assert E % num_heads == 0, "embed_dim must be divisible by num_heads"
    hd = E // num_heads

    # Linear over flattened rows (no layout change needed).
    y = _linear(x.reshape(B * S, E), w_lin.T, tm_max=tm_max)

    # torch's `.view(-1, num_heads, S, hd)` is a pure contiguous reshape —
    # free in XLA, no transpose / extra HBM traffic.
    q = y.reshape(B * num_heads, S, hd)

    bn = B * num_heads
    g = _pick_head_group(bn, S)
    out = pl.pallas_call(
        _attention_kernel,
        out_shape=jax.ShapeDtypeStruct((bn, S, hd), x.dtype),
        grid_spec=pltpu.PrefetchScalarGridSpec(
            num_scalar_prefetch=0,
            grid=(bn // g,),
            in_specs=[pl.BlockSpec((g, S, hd), lambda i: (i, 0, 0))],
            out_specs=pl.BlockSpec((g, S, hd), lambda i: (i, 0, 0)),
        ),
        compiler_params=pltpu.CompilerParams(
            dimension_semantics=("parallel",)),
    )(q)

    return out.reshape(B, S, E)


if __name__ == "__main__":
    # Small shapes consistent with the module: embed_dim=32, num_heads=4,
    # seq=128, batch=2 (embed_dim divisible by num_heads).
    B, S, E, num_heads = 2, 128, 32, 4
    hd = E // num_heads

    key = jax.random.PRNGKey(0)
    kx, kw = jax.random.split(key)
    x = jax.random.normal(kx, (B, S, E), dtype=jnp.float32)
    bound = 1.0 / math.sqrt(E)                      # PyTorch Linear default init
    w = jax.random.uniform(kw, (E, E), jnp.float32, -bound, bound)  # (out, in)

    out = cheap_attention_forward(x, w, num_heads)
    jax.block_until_ready(out)

    # Plain-JAX reference of the same math (eval-mode dropout = identity).
    y_ref = x.reshape(B * S, E) @ w.T
    q_ref = y_ref.reshape(B * num_heads, S, hd)
    s_ref = jnp.einsum("gqd,gkd->gqk", q_ref, q_ref) / math.sqrt(hd)
    a_ref = jax.nn.softmax(s_ref, axis=-1)
    o_ref = jnp.einsum("gqk,gkd->gqd", a_ref, q_ref).reshape(B, S, E)

    assert out.shape == (B, S, E)
    assert jnp.allclose(out, o_ref, atol=2e-2, rtol=2e-2), (
        "max abs diff: %f" % float(jnp.max(jnp.abs(out - o_ref))))

    print("KERNEL_OK")
</pallas_src>

<mosaic_0001>
module attributes {stable_mosaic.version = 11 : i64} {
  func.func @_linear_kernel(%arg0: i32, %arg1: memref<128x32xf32, #tpu.memory_space<vmem>>, %arg2: memref<32x32xf32, #tpu.memory_space<vmem>>, %arg3: memref<128x32xf32, #tpu.memory_space<vmem>>) attributes {dimension_semantics = [#tpu.dimension_semantics<parallel>], iteration_bounds = array<i64: 2>, scalar_prefetch = 0 : i64, scratch_operands = 0 : i64, tpu.core_type = #tpu.core_type<tc>, window_params = [{transform_indices = @transform_0, window_bounds = array<i64: 128, 32>}, {pipeline_mode = #tpu.pipeline_mode<synchronous>, transform_indices = @transform_1, window_bounds = array<i64: 32, 32>}, {transform_indices = @transform_2, window_bounds = array<i64: 128, 32>}]} {
    %c0 = arith.constant 0 : index
    %c0_0 = arith.constant 0 : index
    %0 = vector.load %arg1[%c0, %c0_0] : memref<128x32xf32, #tpu.memory_space<vmem>>, vector<128x32xf32>
    %c0_1 = arith.constant 0 : index
    %c0_2 = arith.constant 0 : index
    %1 = vector.load %arg2[%c0_1, %c0_2] : memref<32x32xf32, #tpu.memory_space<vmem>>, vector<32x32xf32>
    %cst = arith.constant dense<0.000000e+00> : vector<128x32xf32>
    %2 = tpu.matmul %0, %1, %cst {dimension_numbers = #tpu.dot_dimension_numbers<[1], [0], [0], [1], [0, 0, 1, 1], [], []>} : vector<128x32xf32>, vector<32x32xf32>, vector<128x32xf32> -> vector<128x32xf32>
    %c0_3 = arith.constant 0 : index
    %c0_4 = arith.constant 0 : index
    %3 = vector.load %arg3[%c0_3, %c0_4] : memref<128x32xf32, #tpu.memory_space<vmem>>, vector<128x32xf32>
    tpu.vector_store %arg3[%c0_3, %c0_4], %2 {strides = array<i32>} : memref<128x32xf32, #tpu.memory_space<vmem>>, vector<128x32xf32>,
    return
  }
  func.func @transform_0(%arg0: i32) -> (i32, i32) {
    %c0_i32 = arith.constant 0 : i32
    %c0_i32_0 = arith.constant 0 : i32
    return %arg0, %c0_i32 : i32, i32
  }
  func.func @transform_1(%arg0: i32) -> (i32, i32) {
    %c0_i32 = arith.constant 0 : i32
    %c0_i32_0 = arith.constant 0 : i32
    %c0_i32_1 = arith.constant 0 : i32
    return %c0_i32, %c0_i32_0 : i32, i32
  }
  func.func @transform_2(%arg0: i32) -> (i32, i32) {
    %c0_i32 = arith.constant 0 : i32
    %c0_i32_0 = arith.constant 0 : i32
    return %arg0, %c0_i32 : i32, i32
  }
}

</mosaic_0001>

<llo_original>
// kernel: tpu_custom_call.1
$region0: #{tpu_custom_call.1}
  #allocation0 [shape = 'u32[]', space=smem, size = 0x4, offset = 0x4, fixed_abs, tag = 'smem constant byte address 0x4 - core index']
  #allocation1 [shape = 'u32[144,128]{1,0:T(1,128)}', space=vmem, size = 0x12000, scoped, tag = 'internal scratch']
  %s0 = inlined_call_operand.vmem [shape: f32[256,32], index: 0, kind: input, shape index: {}]
  %s1 = inlined_call_operand.vmem [shape: f32[32,32], index: 1, kind: input, shape index: {}]
  %s2 = inlined_call_operand.vmem [shape: f32[256,32], index: 2, kind: output, shape index: {}]
  %s3 = sld [smem:[#allocation0]]
  $region41: #{tpu_custom_call.1} parent=0
    _
  %s5 = ssub.s32 1, %s3
  %s6 = scalar_select 0, %s5, %s3
  loop: start=0, step=1, limit=4
  $region2: #{tpu_custom_call.1} parent=0 // loop_pre_header
    _
  $region3: #{tpu_custom_call.1} parent=0 // loop_header
    %s8 = sphi 0, %s12
    %p9 = scmp.ge.s32.totalorder %s8, 4
    %s18 = sphi 0, %s20
    %s21 = sphi 0, %s18
    %s22 = sphi 0, %s21
    %s38 = sphi 0, %s22
    %s42 = sphi 0, %s42
    %s44 = sphi 0, %s42
    %s45 = sphi 0, %s44
    %s59 = sphi 0, %s45
    %s65 = sphi 0, %s67
    %s68 = sphi 0, %s65
    %s69 = sphi 0, %s68
    %s85 = sphi 0, %s69
  $region4: #{tpu_custom_call.1} parent=0 // loop_header_branch
    %11 = sbr.rel (%p9) target = $region8
  $region5: #{tpu_custom_call.1} parent=0 // loop_body
    %s13 = ssub.s32 %s8, 1
    %s14 = ssub.s32 %s8, 2
    %s15 = sadd.s32 %s8, 1
    %s16 = ssub.s32 %s8, %s15
    %p17 = scmp.eq.s32.totalorder %s16, 0
    %s19 = sadd.s32 %s18, 1
    %s20 = scalar_select %p17, %s18, %s19
    %p23 = pneg %p17
    %p24 = scmp.eq.s32.totalorder %s8, 1
    %p25 = por %p23, %p24
    %p26 = scmp.ne.s32.totalorder %s18, %s21
    %p27 = scmp.eq.s32.totalorder %s8, 0
    %p28 = por %p26, %p27
    %p29 = scmp.ne.s32.totalorder %s18, %s21
    %p30 = scmp.eq.s32.totalorder %s13, 1
    %p31 = por %p29, %p30
    %p32 = scmp.ne.s32.totalorder %s21, %s22
    %p33 = scmp.eq.s32.totalorder %s13, 0
    %p34 = por %p32, %p33
    %p35 = scmp.ne.s32.totalorder %s21, %s22
    %p36 = scmp.eq.s32.totalorder %s14, 1
    %p37 = por %p35, %p36
    %p39 = scmp.ne.s32.totalorder %s22, %s38
    %p40 = scmp.eq.s32.totalorder %s14, 0
    %p41 = por %p39, %p40
    %s43 = sadd.s32 %s42, 1
    %p46 = scmp.eq.s32.totalorder %s8, 1
    %p47 = scmp.ne.s32.totalorder %s42, %s44
    %p48 = scmp.eq.s32.totalorder %s8, 0
    %p49 = por %p47, %p48
    %p50 = scmp.ne.s32.totalorder %s42, %s44
    %p51 = scmp.eq.s32.totalorder %s13, 1
    %p52 = por %p50, %p51
    %p53 = scmp.ne.s32.totalorder %s44, %s45
    %p54 = scmp.eq.s32.totalorder %s13, 0
    %p55 = por %p53, %p54
    %p56 = scmp.ne.s32.totalorder %s44, %s45
    %p57 = scmp.eq.s32.totalorder %s14, 1
    %p58 = por %p56, %p57
    %p60 = scmp.ne.s32.totalorder %s45, %s59
    %p61 = scmp.eq.s32.totalorder %s14, 0
    %p62 = por %p60, %p61
    %s63 = ssub.s32 %s8, %s15
    %p64 = scmp.eq.s32.totalorder %s63, 0
    %s66 = sadd.s32 %s65, 1
    %s67 = scalar_select %p64, %s65, %s66
    %p70 = pneg %p64
    %p71 = scmp.eq.s32.totalorder %s8, 1
    %p72 = por %p70, %p71
    %p73 = scmp.ne.s32.totalorder %s65, %s68
    %p74 = scmp.eq.s32.totalorder %s8, 0
    %p75 = por %p73, %p74
    %p76 = scmp.ne.s32.totalorder %s65, %s68
    %p77 = scmp.eq.s32.totalorder %s13, 1
    %p78 = por %p76, %p77
    %p79 = scmp.ne.s32.totalorder %s68, %s69
    %p80 = scmp.eq.s32.totalorder %s13, 0
    %p81 = por %p79, %p80
    %p82 = scmp.ne.s32.totalorder %s68, %s69
    %p83 = scmp.eq.s32.totalorder %s14, 1
    %p84 = por %p82, %p83
    %p86 = scmp.ne.s32.totalorder %s69, %s85
    %p87 = scmp.eq.s32.totalorder %s14, 0
    %p88 = por %p86, %p87
    %p89 = scmp.le.s32.totalorder 1, %s8
    %p90 = scmp.lt.s32.totalorder %s8, 3
    %p91 = pnand %p89, %p90
    %p92 = pneg %p91
    // Predicated region
    $region9: #{tpu_custom_call.1} parent=5 // pred_check
      _
    $region10: #{tpu_custom_call.1} parent=5 // pred_check_branch
      %94 = sbr.rel (%p91) target = $region12
    $region11: #{tpu_custom_call.1} parent=5 // pred_region
      %s95 = ssub.s32 %s8, 1
      // Predicated region
      $region13: #{tpu_custom_call.1} parent=11 // pred_check
        %p96 = pneg %p55
      $region14: #{tpu_custom_call.1} parent=11 // pred_check_branch
        %98 = sbr.rel (%p96) target = $region16
      $region15: #{tpu_custom_call.1} parent=11 // pred_region
        _
      $region16: #{tpu_custom_call.1} parent=11 // pred_fallthru
        _
    $region12: #{tpu_custom_call.1} parent=5 // pred_fallthru
      _
    %p99 = scmp.lt.s32.totalorder %s8, 2
    // Predicated region
    $region17: #{tpu_custom_call.1} parent=5 // pred_check
      %p100 = pneg %p99
    $region18: #{tpu_custom_call.1} parent=5 // pred_check_branch
      %102 = sbr.rel (%p100) target = $region20
    $region19: #{tpu_custom_call.1} parent=5 // pred_region
      // Predicated region
      $region21: #{tpu_custom_call.1} parent=19 // pred_check
        %p103 = pneg %p28
      $region22: #{tpu_custom_call.1} parent=19 // pred_check_branch
        %105 = sbr.rel (%p103) target = $region24
      $region23: #{tpu_custom_call.1} parent=19 // pred_region
        %s106 = smul.u32 16, %s8
        %p107 = scmp.lt.s32.totalorder %s106, 31
        %s108 = scalar_select %p107, %s106, 31
        %s109 = smul.addr %s108, 8
        %s110 = scalar_lea.vmem %s0, %s109
        %s111 = smul.u32 16, %s8
      $region24: #{tpu_custom_call.1} parent=19 // pred_fallthru
        _
    $region20: #{tpu_custom_call.1} parent=5 // pred_fallthru
      _
    %p112 = scmp.le.s32.totalorder 1, %s8
    %p113 = scmp.lt.s32.totalorder %s8, 3
    %p114 = pnand %p112, %p113
    %p115 = pneg %p114
    // Predicated region
    $region25: #{tpu_custom_call.1} parent=5 // pred_check
      _
    $region26: #{tpu_custom_call.1} parent=5 // pred_check_branch
      %117 = sbr.rel (%p114) target = $region28
    $region27: #{tpu_custom_call.1} parent=5 // pred_region
      %s118 = ssub.s32 %s8, 1
      %s119 = smul.u32 16, %s13
      %p120 = scmp.lt.s32.totalorder %s119, 31
      %s121 = scalar_select %p120, %s119, 31
      %s122 = smul.addr %s121, 8
      %s123 = scalar_lea.vmem %s0, %s122
      %p124 = pneg %p34
      %p125 = pneg %p31
      %p126 = pneg %p55
      %p127 = pneg %p52
      %p128 = pneg %p81
      %p129 = pneg %p78
      %s130 = smul.u32 16, %s13
      %p131 = scmp.lt.s32.totalorder %s130, 31
      %s132 = scalar_select %p131, %s130, 31
      %s133 = smul.addr %s132, 8
      %s134 = scalar_lea.vmem %s2, %s133
      %s135 = smul.u32 16, %s13
      %p136 = scmp.lt.s32.totalorder %s135, 31
      %s137 = scalar_select %p136, %s135, 31
      %s138 = smul.addr %s137, 8
      %s139 = scalar_lea.vmem %s0, %s138
      %s140 = smul.u32 16, %s13
      %s141 = smul.u32 16, %s13
      %p142 = scmp.lt.s32.totalorder %s141, 31
      %s143 = scalar_select %p142, %s141, 31
      %s144 = smul.addr %s143, 8
      %s145 = scalar_lea.vmem %s2, %s144
      %s146 = smul.u32 16, %s13
      %v147 = vld [vmem:[%s139] sm:$0xff]
      %v148 = vld [vmem:[%s139 + $0x8] sm:$0xff]
      %v149 = vld [vmem:[%s139 + $0x10] sm:$0xff]
      %v150 = vld [vmem:[%s139 + $0x18] sm:$0xff]
      %v151 = vld [vmem:[%s139 + $0x20] sm:$0xff]
      %v152 = vld [vmem:[%s139 + $0x28] sm:$0xff]
      %v153 = vld [vmem:[%s139 + $0x30] sm:$0xff]
      %v154 = vld [vmem:[%s139 + $0x38] sm:$0xff]
      %v155 = vld [vmem:[%s139 + $0x40] sm:$0xff]
      %v156 = vld [vmem:[%s139 + $0x48] sm:$0xff]
      %v157 = vld [vmem:[%s139 + $0x50] sm:$0xff]
      %v158 = vld [vmem:[%s139 + $0x58] sm:$0xff]
      %v159 = vld [vmem:[%s139 + $0x60] sm:$0xff]
      %v160 = vld [vmem:[%s139 + $0x68] sm:$0xff]
      %v161 = vld [vmem:[%s139 + $0x70] sm:$0xff]
      %v162 = vld [vmem:[%s139 + $0x78] sm:$0xff]
      %v163 = vld [vmem:[%s1] sm:$0xff]
      %v164 = vld [vmem:[%s1 + $0x8] sm:$0xff]
      %v165 = vld [vmem:[%s1 + $0x10] sm:$0xff]
      %v166 = vld [vmem:[%s1 + $0x18] sm:$0xff]
      %vm167 = vcmask 261120
      %v169 = vsel %vm167, %v147, 0
      %v172 = vsel %vm167, %v148, 0
      %v175 = vsel %vm167, %v149, 0
      %v178 = vsel %vm167, %v150, 0
      %v181 = vsel %vm167, %v151, 0
      %v184 = vsel %vm167, %v152, 0
      %v187 = vsel %vm167, %v153, 0
      %v190 = vsel %vm167, %v154, 0
      %v193 = vsel %vm167, %v155, 0
      %v196 = vsel %vm167, %v156, 0
      %v199 = vsel %vm167, %v157, 0
      %v202 = vsel %vm167, %v158, 0
      %v205 = vsel %vm167, %v159, 0
      %v208 = vsel %vm167, %v160, 0
      %v211 = vsel %vm167, %v161, 0
      %v214 = vsel %vm167, %v162, 0
      %216 = vmatprep.subr.mxu0 0.0
      %217 = vmatpush1.msra.mxu0 0.0
      %218 = vmatprep.subr.mxu0 0.0
      %219 = vmatpush1.msra.mxu0 0.0
      %220 = vmatprep.subr.mxu0 0.0
      %221 = vmatpush1.msra.mxu0 0.0
      %222 = vmatprep.subr.mxu0 0.0
      %223 = vmatpush1.msra.mxu0 0.0
      %224 = vmatprep.subr.mxu0 0.0
      %225 = vmatpush1.msra.mxu0 0.0
      %226 = vmatprep.subr.mxu0 0.0
      %227 = vmatpush1.msra.mxu0 0.0
      %228 = vmatprep.subr.mxu0 0.0
      %229 = vmatpush1.msra.mxu0 0.0
      %230 = vmatprep.subr.mxu0 0.0
      %231 = vmatpush1.msra.mxu0 0.0
      %232 = vmatprep.subr.mxu0 0.0
      %233 = vmatpush1.msra.mxu0 0.0
      %234 = vmatprep.subr.mxu0 0.0
      %235 = vmatpush1.msra.mxu0 0.0
      %236 = vmatprep.subr.mxu0 0.0
      %237 = vmatpush1.msra.mxu0 0.0
      %238 = vmatprep.subr.mxu0 0.0
      %239 = vmatpush1.msra.mxu0 0.0
      %240 = vmatprep.subr.mxu0 0.0
      %241 = vmatpush1.msra.mxu0 %v166
      %242 = vmatprep.subr.mxu0 0.0
      %243 = vmatpush1.msra.mxu0 %v165
      %244 = vmatprep.subr.mxu0 0.0
      %245 = vmatpush1.msra.mxu0 %v164
      %246 = vmatprep.subr.mxu0 0.0
      %247 = vmatpush1.msra.mxu0 %v163
      %248 = vmatprep.subr.mxu0 0.0
      %249 = vmatpush2.msra.mxu0 0.0
      %250 = vmatprep.subr.mxu0 0.0
      %251 = vmatpush2.msra.mxu0 0.0
      %252 = vmatprep.subr.mxu0 0.0
      %253 = vmatpush2.msra.mxu0 0.0
      %254 = vmatprep.subr.mxu0 0.0
      %255 = vmatpush2.msra.mxu0 0.0
      %256 = vmatprep.subr.mxu0 0.0
      %257 = vmatpush2.msra.mxu0 0.0
      %258 = vmatprep.subr.mxu0 0.0
      %259 = vmatpush2.msra.mxu0 0.0
      %260 = vmatprep.subr.mxu0 0.0
      %261 = vmatpush2.msra.mxu0 0.0
      %262 = vmatprep.subr.mxu0 0.0
      %263 = vmatpush2.msra.mxu0 0.0
      %264 = vmatprep.subr.mxu0 0.0
      %265 = vmatpush2.msra.mxu0 0.0
      %266 = vmatprep.subr.mxu0 0.0
      %267 = vmatpush2.msra.mxu0 0.0
      %268 = vmatprep.subr.mxu0 0.0
      %269 = vmatpush2.msra.mxu0 0.0
      %270 = vmatprep.subr.mxu0 0.0
      %271 = vmatpush2.msra.mxu0 0.0
      %272 = vmatprep.subr.mxu0 0.0
      %273 = vmatpush2.msra.mxu0 0.0
      %274 = vmatprep.subr.mxu0 0.0
      %275 = vmatpush2.msra.mxu0 0.0
      %276 = vmatprep.subr.mxu0 0.0
      %277 = vmatpush2.msra.mxu0 0.0
      %278 = vmatprep.subr.mxu0 0.0
      %279 = vmatpush2.msra.mxu0 0.0
      %280 = vmatprep.mubr.f32.mxu0 0.0
      %281 = vmatmul.mubr.f32.gmra.mxu0 %v169
      %v282 = vpop.f32.mrf.mxu0
      %v283 = vadd.f32 0.0, %v282
      %v284 = vpop.f32.mrf.mxu0
      %285 = vmatprep.mubr.f32.mxu0 0.0
      %286 = vmatmul.mubr.f32.gmra.mxu0 %v172
      %v287 = vpop.f32.mrf.mxu0
      %v288 = vadd.f32 0.0, %v287
      %v289 = vpop.f32.mrf.mxu0
      %290 = vmatprep.mubr.f32.mxu0 0.0
      %291 = vmatmul.mubr.f32.gmra.mxu0 %v175
      %v292 = vpop.f32.mrf.mxu0
      %v293 = vadd.f32 0.0, %v292
      %v294 = vpop.f32.mrf.mxu0
      %295 = vmatprep.mubr.f32.mxu0 0.0
      %296 = vmatmul.mubr.f32.gmra.mxu0 %v178
      %v297 = vpop.f32.mrf.mxu0
      %v298 = vadd.f32 0.0, %v297
      %v299 = vpop.f32.mrf.mxu0
      %300 = vmatprep.mubr.f32.mxu0 0.0
      %301 = vmatmul.mubr.f32.gmra.mxu0 %v181
      %v302 = vpop.f32.mrf.mxu0
      %v303 = vadd.f32 0.0, %v302
      %v304 = vpop.f32.mrf.mxu0
      %305 = vmatprep.mubr.f32.mxu0 0.0
      %306 = vmatmul.mubr.f32.gmra.mxu0 %v184
      %v307 = vpop.f32.mrf.mxu0
      %v308 = vadd.f32 0.0, %v307
      %v309 = vpop.f32.mrf.mxu0
      %310 = vmatprep.mubr.f32.mxu0 0.0
      %311 = vmatmul.mubr.f32.gmra.mxu0 %v187
      %v312 = vpop.f32.mrf.mxu0
      %v313 = vadd.f32 0.0, %v312
      %v314 = vpop.f32.mrf.mxu0
      %315 = vmatprep.mubr.f32.mxu0 0.0
      %316 = vmatmul.mubr.f32.gmra.mxu0 %v190
      %v317 = vpop.f32.mrf.mxu0
      %v318 = vadd.f32 0.0, %v317
      %v319 = vpop.f32.mrf.mxu0
      %320 = vmatprep.mubr.f32.mxu0 0.0
      %321 = vmatmul.mubr.f32.gmra.mxu0 %v193
      %v322 = vpop.f32.mrf.mxu0
      %v323 = vadd.f32 0.0, %v322
      %v324 = vpop.f32.mrf.mxu0
      %325 = vmatprep.mubr.f32.mxu0 0.0
      %326 = vmatmul.mubr.f32.gmra.mxu0 %v196
      %v327 = vpop.f32.mrf.mxu0
      %v328 = vadd.f32 0.0, %v327
      %v329 = vpop.f32.mrf.mxu0
      %330 = vmatprep.mubr.f32.mxu0 0.0
      %331 = vmatmul.mubr.f32.gmra.mxu0 %v199
      %v332 = vpop.f32.mrf.mxu0
      %v333 = vadd.f32 0.0, %v332
      %v334 = vpop.f32.mrf.mxu0
      %335 = vmatprep.mubr.f32.mxu0 0.0
      %336 = vmatmul.mubr.f32.gmra.mxu0 %v202
      %v337 = vpop.f32.mrf.mxu0
      %v338 = vadd.f32 0.0, %v337
      %v339 = vpop.f32.mrf.mxu0
      %340 = vmatprep.mubr.f32.mxu0 0.0
      %341 = vmatmul.mubr.f32.gmra.mxu0 %v205
      %v342 = vpop.f32.mrf.mxu0
      %v343 = vadd.f32 0.0, %v342
      %v344 = vpop.f32.mrf.mxu0
      %345 = vmatprep.mubr.f32.mxu0 0.0
      %346 = vmatmul.mubr.f32.gmra.mxu0 %v208
      %v347 = vpop.f32.mrf.mxu0
      %v348 = vadd.f32 0.0, %v347
      %v349 = vpop.f32.mrf.mxu0
      %350 = vmatprep.mubr.f32.mxu0 0.0
      %351 = vmatmul.mubr.f32.gmra.mxu0 %v211
      %v352 = vpop.f32.mrf.mxu0
      %v353 = vadd.f32 0.0, %v352
      %v354 = vpop.f32.mrf.mxu0
      %355 = vmatprep.mubr.f32.mxu0 0.0
      %356 = vmatmul.mubr.f32.gmra.mxu0 %v214
      %v357 = vpop.f32.mrf.mxu0
      %v358 = vadd.f32 0.0, %v357
      %v359 = vpop.f32.mrf.mxu0
      %360 = vdwg.mxu0
      %361 = vst.msk [vmem:[%s145] sm:$0xff] %vm167, %v283
      %362 = vst.msk [vmem:[%s145 + $0x8] sm:$0xff] %vm167, %v288
      %363 = vst.msk [vmem:[%s145 + $0x10] sm:$0xff] %vm167, %v293
      %364 = vst.msk [vmem:[%s145 + $0x18] sm:$0xff] %vm167, %v298
      %365 = vst.msk [vmem:[%s145 + $0x20] sm:$0xff] %vm167, %v303
      %366 = vst.msk [vmem:[%s145 + $0x28] sm:$0xff] %vm167, %v308
      %367 = vst.msk [vmem:[%s145 + $0x30] sm:$0xff] %vm167, %v313
      %368 = vst.msk [vmem:[%s145 + $0x38] sm:$0xff] %vm167, %v318
      %369 = vst.msk [vmem:[%s145 + $0x40] sm:$0xff] %vm167, %v323
      %370 = vst.msk [vmem:[%s145 + $0x48] sm:$0xff] %vm167, %v328
      %371 = vst.msk [vmem:[%s145 + $0x50] sm:$0xff] %vm167, %v333
      %372 = vst.msk [vmem:[%s145 + $0x58] sm:$0xff] %vm167, %v338
      %373 = vst.msk [vmem:[%s145 + $0x60] sm:$0xff] %vm167, %v343
      %374 = vst.msk [vmem:[%s145 + $0x68] sm:$0xff] %vm167, %v348
      %375 = vst.msk [vmem:[%s145 + $0x70] sm:$0xff] %vm167, %v353
      %376 = vst.msk [vmem:[%s145 + $0x78] sm:$0xff] %vm167, %v358
      %s377 = smul.u32 16, %s13
      %p378 = scmp.lt.s32.totalorder %s377, 31
      %s379 = scalar_select %p378, %s377, 31
      %s380 = smul.addr %s379, 8
      %s381 = scalar_lea.vmem %s2, %s380
      // Predicated region
      $region29: #{tpu_custom_call.1} parent=27 // pred_check
        %p382 = pneg %p78
      $region30: #{tpu_custom_call.1} parent=27 // pred_check_branch
        %384 = sbr.rel (%p382) target = $region32
      $region31: #{tpu_custom_call.1} parent=27 // pred_region
        %s385 = smul.u32 16, %s13
      $region32: #{tpu_custom_call.1} parent=27 // pred_fallthru
        _
    $region28: #{tpu_custom_call.1} parent=5 // pred_fallthru
      _
    %p386 = scmp.le.s32.totalorder 2, %s8
    // Predicated region
    $region33: #{tpu_custom_call.1} parent=5 // pred_check
      %p387 = pneg %p386
    $region34: #{tpu_custom_call.1} parent=5 // pred_check_branch
      %389 = sbr.rel (%p387) target = $region36
    $region35: #{tpu_custom_call.1} parent=5 // pred_region
      %s390 = ssub.s32 %s8, 2
      // Predicated region
      $region37: #{tpu_custom_call.1} parent=35 // pred_check
        %p391 = pneg %p84
      $region38: #{tpu_custom_call.1} parent=35 // pred_check_branch
        %393 = sbr.rel (%p391) target = $region40
      $region39: #{tpu_custom_call.1} parent=35 // pred_region
        %s394 = smul.u32 16, %s14
        %p395 = scmp.lt.s32.totalorder %s394, 31
        %s396 = scalar_select %p395, %s394, 31
        %s397 = smul.addr %s396, 8
        %s398 = scalar_lea.vmem %s2, %s397
      $region40: #{tpu_custom_call.1} parent=35 // pred_fallthru
        _
    $region36: #{tpu_custom_call.1} parent=5 // pred_fallthru
      _
  $region6: #{tpu_custom_call.1} parent=0 // loop_footer
    %s12 = sadd.s32 1, %s8
  $region7: #{tpu_custom_call.1} parent=0 // loop_footer_branch
    %7 = sbr.rel target = $region3
  $region8: #{tpu_custom_call.1} parent=0 // loop_exit
    _

</llo_original>
